<compile_context>
chip_gen: v6e
topology: v6e:2x2x1
jax: 0.10.0
libtpu: 0.0.40
codegen_flags: <defaults>
</compile_context>

<pallas_src>
import functools

import jax
import jax.numpy as jnp
from jax import lax
from jax.experimental import pallas as pl
from jax.experimental.pallas import tpu as pltpu


# ---------------------------------------------------------------------------
# Kernel
# ---------------------------------------------------------------------------
def _mlp_kernel(x_ref,
                w1_ref, b1_ref,
                w2_ref, b2_ref,
                w3_ref, b3_ref,
                w4_ref, b4_ref,
                o_ref,
                *, bf16_epilogue):
    """Fused 4-layer MLP on one (TB, in_channels) batch tile.

    x_ref : (TB, in_channels)   float32 (natural PyTorch layout)
    w_k   : (out_k, in_k)       compute dtype (PyTorch Linear layout, bf16)
    b_k   : (out_k, 1)          float32
    o_ref : (out_channels, TB)  float32 (feature-major, lane-dense store)
    """
    compute_dtype = w1_ref.dtype

    def bias_relu6(z_f32, b_ref):
        if bf16_epilogue:
            # v6e / v7x: bf16 VALU -> bias-add + clip in the narrow dtype
            # (halves VPU element ops and intermediate bytes; 0 and 6 exact).
            z = z_f32.astype(compute_dtype) + b_ref[...].astype(compute_dtype)
            return jnp.clip(z, 0.0, 6.0)
        # v5e (f32-only VALU): bias-add + clip in f32, then narrow for the MXU.
        return jnp.clip(z_f32 + b_ref[...], 0.0, 6.0).astype(compute_dtype)

    # In-kernel layout/dtype handling of the natural-layout input tile.
    x = x_ref[...].astype(compute_dtype)                         # (TB, in) bf16

    # Layer 1 contracts over x's last dim (== W1 @ x^T); the only (small)
    # transpose in the whole chain is of the (TB, 16) input, handled by the
    # XLU which has slack here.  Everything downstream is feature-major.
    z1 = lax.dot_general(w1_ref[...], x,
                         dimension_numbers=(((1,), (1,)), ((), ())),
                         preferred_element_type=jnp.float32)     # (64, TB)
    h = bias_relu6(z1, b1_ref)
    z2 = jnp.dot(w2_ref[...], h, preferred_element_type=jnp.float32)  # (128, TB)
    h = bias_relu6(z2, b2_ref)
    z3 = jnp.dot(w3_ref[...], h, preferred_element_type=jnp.float32)  # (128, TB)
    h = bias_relu6(z3, b3_ref)
    out = (jnp.dot(w4_ref[...], h, preferred_element_type=jnp.float32)
           + b4_ref[...])                                        # (out, TB) f32

    o_ref[...] = out.astype(o_ref.dtype)


# ---------------------------------------------------------------------------
# Wrapper
# ---------------------------------------------------------------------------
def _cdiv(a, b):
    return (a + b - 1) // b


def _round_up(n, m):
    return ((n + m - 1) // m) * m


def prepare_params(params, compute_dtype=jnp.bfloat16):
    """One-time parameter prep (NOT on the per-call path).

    Keeps the PyTorch (out_features, in_features) weight layout (no transpose
    needed for the feature-major kernel), casts weights to the MXU compute
    dtype, and reshapes biases to column vectors (out, 1) in f32.
    """
    prepared = {}
    for k in (1, 2, 3, 4):
        prepared[f"w{k}"] = params[f"w{k}"].astype(compute_dtype)
        prepared[f"b{k}"] = params[f"b{k}"].reshape(-1, 1).astype(jnp.float32)
    return prepared


def _bf16_epilogue_default():
    """bf16 bias-add/clip only on chips with a bf16 VALU (v6e / v7x).

    A false positive is still numerically correct (bf16 arithmetic is always
    supported), so this heuristic is safe; unknown devices fall back to f32.
    """
    try:
        kind = jax.devices()[0].device_kind.lower()
    except Exception:
        return False
    return any(tag in kind for tag in ("v6", "v7", "7x", "trillium"))


@functools.partial(jax.jit, static_argnames=("block_batch", "bf16_epilogue"))
def simple_linear_model(x, prepared, *, block_batch=8192, bf16_epilogue=False):
    """Forward pass of SimpleLinearModel.

    x        : (batch, in_channels) float32 (natural layout; no copies made)
    prepared : output of prepare_params()
    returns  : (batch, out_channels) in x.dtype
    """
    batch, in_channels = x.shape
    out_channels = prepared["w4"].shape[0]

    # Lane-dense batch tile (multiple of 128), capped at block_batch, and sized
    # so the grid has >= 2 steps whenever batch > 128 (lets the "parallel"
    # batch axis actually use both v7x TensorCores).  Ragged tail handled by a
    # partial final block -- no padding pass.
    tb = min(block_batch, _round_up(_cdiv(batch, 2), 128))
    grid = (_cdiv(batch, tb),)

    args = [x]
    for k in (1, 2, 3, 4):
        args.append(prepared[f"w{k}"])
        args.append(prepared[f"b{k}"])

    in_specs = [pl.BlockSpec((tb, in_channels), lambda i: (i, 0))]
    for a in args[1:]:
        # Weights / biases: full-extent block, resident across the whole grid.
        in_specs.append(pl.BlockSpec(a.shape, lambda i: (0, 0)))

    flops = 2 * batch * (in_channels * 64 + 64 * 128 + 128 * 128
                         + 128 * out_channels)
    bytes_accessed = int(
        batch * in_channels * x.dtype.itemsize
        + sum(int(a.size) * a.dtype.itemsize for a in args[1:])
        + batch * out_channels * 4)

    out_t = pl.pallas_call(
        functools.partial(_mlp_kernel, bf16_epilogue=bf16_epilogue),
        out_shape=jax.ShapeDtypeStruct((out_channels, batch), jnp.float32),
        grid=grid,
        in_specs=in_specs,
        out_specs=pl.BlockSpec((out_channels, tb), lambda i: (0, i)),
        compiler_params=pltpu.CompilerParams(
            dimension_semantics=("parallel",),
            vmem_limit_bytes=32 * 1024 * 1024),
        cost_estimate=pl.CostEstimate(
            flops=int(flops), transcendentals=0, bytes_accessed=bytes_accessed),
    )(*args)

    # Tiny (out_channels x batch) transpose back to the PyTorch layout.
    return out_t.T.astype(x.dtype)


# ---------------------------------------------------------------------------
# Parameter init + references (for the self-test)
# ---------------------------------------------------------------------------
def _init_params(key, in_channels, out_channels, dtype=jnp.float32):
    """Deterministic synthetic init, same shapes as the PyTorch module."""
    sizes = [(64, in_channels), (128, 64), (128, 128), (out_channels, 128)]
    params = {}
    for i, (fan_out, fan_in) in enumerate(sizes, start=1):
        key, kw, kb = jax.random.split(key, 3)
        bound = 1.0 / (fan_in ** 0.5)
        params[f"w{i}"] = jax.random.uniform(
            kw, (fan_out, fan_in), dtype, minval=-bound, maxval=bound)
        params[f"b{i}"] = jax.random.uniform(
            kb, (fan_out,), dtype, minval=-bound, maxval=bound)
    return params


def _reference(x, params, compute_dtype=jnp.float32, bf16_bias=False):
    """Plain-JAX reference of the PyTorch forward.

    compute_dtype / bf16_bias let the reference mirror the kernel's precision
    choices (bf16 MXU operands, f32 accumulation, optional bf16 epilogue).
    """
    relu6 = lambda v: jnp.clip(v, 0.0, 6.0)
    h = x.astype(compute_dtype)
    for k in (1, 2, 3):
        w = params[f"w{k}"].astype(compute_dtype)
        z = jnp.dot(h, w.T, preferred_element_type=jnp.float32)
        if bf16_bias:
            h = relu6(z.astype(compute_dtype)
                      + params[f"b{k}"].astype(compute_dtype)).astype(compute_dtype)
        else:
            h = relu6(z + params[f"b{k}"]).astype(compute_dtype)
    w4 = params["w4"].astype(compute_dtype)
    return jnp.dot(h, w4.T, preferred_element_type=jnp.float32) + params["b4"]


if __name__ == "__main__":
    in_channels, out_channels, batch = 16, 4, 8

    key = jax.random.PRNGKey(0)
    kx, kp = jax.random.split(key)
    x = jax.random.normal(kx, (batch, in_channels), jnp.float32)
    params = _init_params(kp, in_channels, out_channels)

    prepared = prepare_params(params, compute_dtype=jnp.bfloat16)
    bf16_epi = _bf16_epilogue_default()

    out = simple_linear_model(x, prepared, bf16_epilogue=bf16_epi)
    out = jax.block_until_ready(out)

    assert out.shape == (batch, out_channels), out.shape

    # Tight check vs a precision-matched (bf16-operand, f32-accum, same
    # epilogue precision) reference.
    ref_matched = _reference(x, params, compute_dtype=jnp.bfloat16,
                             bf16_bias=bf16_epi)
    assert jnp.allclose(out, ref_matched, atol=2e-3, rtol=2e-3), \
        "mismatch vs precision-matched reference"

    # Loose check vs the full-f32 PyTorch-equivalent reference.
    ref_f32 = _reference(x, params, compute_dtype=jnp.float32)
    assert jnp.allclose(out, ref_f32, atol=5e-2, rtol=5e-2), \
        "mismatch vs f32 reference"

    print("KERNEL_OK")
</pallas_src>

<mosaic_0001>
module attributes {stable_mosaic.version = 11 : i64} {
  func.func @_mlp_kernel(%arg0: i32, %arg1: memref<128x16xf32, #tpu.memory_space<vmem>>, %arg2: memref<64x16xbf16, #tpu.memory_space<vmem>>, %arg3: memref<64x1xf32, #tpu.memory_space<vmem>>, %arg4: memref<128x64xbf16, #tpu.memory_space<vmem>>, %arg5: memref<128x1xf32, #tpu.memory_space<vmem>>, %arg6: memref<128x128xbf16, #tpu.memory_space<vmem>>, %arg7: memref<128x1xf32, #tpu.memory_space<vmem>>, %arg8: memref<4x128xbf16, #tpu.memory_space<vmem>>, %arg9: memref<4x1xf32, #tpu.memory_space<vmem>>, %arg10: memref<4x128xf32, #tpu.memory_space<vmem>>) attributes {dimension_semantics = [#tpu.dimension_semantics<parallel>], iteration_bounds = array<i64: 1>, scalar_prefetch = 0 : i64, scratch_operands = 0 : i64, tpu.core_type = #tpu.core_type<tc>, window_params = [{transform_indices = @transform_0, window_bounds = array<i64: 128, 16>}, {pipeline_mode = #tpu.pipeline_mode<synchronous>, transform_indices = @transform_1, window_bounds = array<i64: 64, 16>}, {pipeline_mode = #tpu.pipeline_mode<synchronous>, transform_indices = @transform_2, window_bounds = array<i64: 64, 1>}, {pipeline_mode = #tpu.pipeline_mode<synchronous>, transform_indices = @transform_3, window_bounds = array<i64: 128, 64>}, {pipeline_mode = #tpu.pipeline_mode<synchronous>, transform_indices = @transform_4, window_bounds = array<i64: 128, 1>}, {pipeline_mode = #tpu.pipeline_mode<synchronous>, transform_indices = @transform_5, window_bounds = array<i64: 128, 128>}, {pipeline_mode = #tpu.pipeline_mode<synchronous>, transform_indices = @transform_6, window_bounds = array<i64: 128, 1>}, {pipeline_mode = #tpu.pipeline_mode<synchronous>, transform_indices = @transform_7, window_bounds = array<i64: 4, 128>}, {pipeline_mode = #tpu.pipeline_mode<synchronous>, transform_indices = @transform_8, window_bounds = array<i64: 4, 1>}, {transform_indices = @transform_9, window_bounds = array<i64: 4, 128>}]} {
    %c0 = arith.constant 0 : index
    %c0_0 = arith.constant 0 : index
    %0 = vector.load %arg1[%c0, %c0_0] : memref<128x16xf32, #tpu.memory_space<vmem>>, vector<128x16xf32>
    %1 = arith.truncf %0 : vector<128x16xf32> to vector<128x16xbf16>
    %c0_1 = arith.constant 0 : index
    %c0_2 = arith.constant 0 : index
    %2 = vector.load %arg2[%c0_1, %c0_2] : memref<64x16xbf16, #tpu.memory_space<vmem>>, vector<64x16xbf16>
    %cst = arith.constant dense<0.000000e+00> : vector<64x128xf32>
    %3 = tpu.matmul %2, %1, %cst {dimension_numbers = #tpu.dot_dimension_numbers<[1], [1], [0], [0], [0, 0, 1, 0], [], []>} : vector<64x16xbf16>, vector<128x16xbf16>, vector<64x128xf32> -> vector<64x128xf32>
    %c0_3 = arith.constant 0 : index
    %c0_4 = arith.constant 0 : index
    %4 = vector.load %arg3[%c0_3, %c0_4] : memref<64x1xf32, #tpu.memory_space<vmem>>, vector<64x1xf32>
    %5 = vector.broadcast %4 : vector<64x1xf32> to vector<64x128xf32>
    %6 = arith.addf %3, %5 : vector<64x128xf32>
    %cst_5 = arith.constant 0.000000e+00 : f32
    %cst_6 = arith.constant 6.000000e+00 : f32
    %7 = vector.broadcast %cst_5 : f32 to vector<64x128xf32>
    %8 = arith.maximumf %7, %6 : vector<64x128xf32>
    %9 = vector.broadcast %cst_6 : f32 to vector<64x128xf32>
    %10 = arith.minimumf %9, %8 : vector<64x128xf32>
    %11 = arith.truncf %10 : vector<64x128xf32> to vector<64x128xbf16>
    %c0_7 = arith.constant 0 : index
    %c0_8 = arith.constant 0 : index
    %12 = vector.load %arg4[%c0_7, %c0_8] : memref<128x64xbf16, #tpu.memory_space<vmem>>, vector<128x64xbf16>
    %cst_9 = arith.constant dense<0.000000e+00> : vector<128x128xf32>
    %13 = tpu.matmul %12, %11, %cst_9 {dimension_numbers = #tpu.dot_dimension_numbers<[1], [0], [0], [1], [0, 0, 1, 1], [], []>} : vector<128x64xbf16>, vector<64x128xbf16>, vector<128x128xf32> -> vector<128x128xf32>
    %c0_10 = arith.constant 0 : index
    %c0_11 = arith.constant 0 : index
    %14 = vector.load %arg5[%c0_10, %c0_11] : memref<128x1xf32, #tpu.memory_space<vmem>>, vector<128x1xf32>
    %15 = vector.broadcast %14 : vector<128x1xf32> to vector<128x128xf32>
    %16 = arith.addf %13, %15 : vector<128x128xf32>
    %cst_12 = arith.constant 0.000000e+00 : f32
    %cst_13 = arith.constant 6.000000e+00 : f32
    %17 = vector.broadcast %cst_12 : f32 to vector<128x128xf32>
    %18 = arith.maximumf %17, %16 : vector<128x128xf32>
    %19 = vector.broadcast %cst_13 : f32 to vector<128x128xf32>
    %20 = arith.minimumf %19, %18 : vector<128x128xf32>
    %21 = arith.truncf %20 : vector<128x128xf32> to vector<128x128xbf16>
    %c0_14 = arith.constant 0 : index
    %c0_15 = arith.constant 0 : index
    %22 = vector.load %arg6[%c0_14, %c0_15] : memref<128x128xbf16, #tpu.memory_space<vmem>>, vector<128x128xbf16>
    %cst_16 = arith.constant dense<0.000000e+00> : vector<128x128xf32>
    %23 = tpu.matmul %22, %21, %cst_16 {dimension_numbers = #tpu.dot_dimension_numbers<[1], [0], [0], [1], [0, 0, 1, 1], [], []>} : vector<128x128xbf16>, vector<128x128xbf16>, vector<128x128xf32> -> vector<128x128xf32>
    %c0_17 = arith.constant 0 : index
    %c0_18 = arith.constant 0 : index
    %24 = vector.load %arg7[%c0_17, %c0_18] : memref<128x1xf32, #tpu.memory_space<vmem>>, vector<128x1xf32>
    %25 = vector.broadcast %24 : vector<128x1xf32> to vector<128x128xf32>
    %26 = arith.addf %23, %25 : vector<128x128xf32>
    %cst_19 = arith.constant 0.000000e+00 : f32
    %cst_20 = arith.constant 6.000000e+00 : f32
    %27 = vector.broadcast %cst_19 : f32 to vector<128x128xf32>
    %28 = arith.maximumf %27, %26 : vector<128x128xf32>
    %29 = vector.broadcast %cst_20 : f32 to vector<128x128xf32>
    %30 = arith.minimumf %29, %28 : vector<128x128xf32>
    %31 = arith.truncf %30 : vector<128x128xf32> to vector<128x128xbf16>
    %c0_21 = arith.constant 0 : index
    %c0_22 = arith.constant 0 : index
    %32 = vector.load %arg8[%c0_21, %c0_22] : memref<4x128xbf16, #tpu.memory_space<vmem>>, vector<4x128xbf16>
    %cst_23 = arith.constant dense<0.000000e+00> : vector<4x128xf32>
    %33 = tpu.matmul %32, %31, %cst_23 {dimension_numbers = #tpu.dot_dimension_numbers<[1], [0], [0], [1], [0, 0, 1, 1], [], []>} : vector<4x128xbf16>, vector<128x128xbf16>, vector<4x128xf32> -> vector<4x128xf32>
    %c0_24 = arith.constant 0 : index
    %c0_25 = arith.constant 0 : index
    %34 = vector.load %arg9[%c0_24, %c0_25] : memref<4x1xf32, #tpu.memory_space<vmem>>, vector<4x1xf32>
    %35 = vector.broadcast %34 : vector<4x1xf32> to vector<4x128xf32>
    %36 = arith.addf %33, %35 : vector<4x128xf32>
    %c0_26 = arith.constant 0 : index
    %c0_27 = arith.constant 0 : index
    %37 = vector.load %arg10[%c0_26, %c0_27] : memref<4x128xf32, #tpu.memory_space<vmem>>, vector<4x128xf32>
    tpu.vector_store %arg10[%c0_26, %c0_27], %36 {strides = array<i32>} : memref<4x128xf32, #tpu.memory_space<vmem>>, vector<4x128xf32>,
    return
  }
  func.func @transform_0(%arg0: i32) -> (i32, i32) {
    %c0_i32 = arith.constant 0 : i32
    %c0_i32_0 = arith.constant 0 : i32
    return %arg0, %c0_i32 : i32, i32
  }
  func.func @transform_1(%arg0: i32) -> (i32, i32) {
    %c0_i32 = arith.constant 0 : i32
    %c0_i32_0 = arith.constant 0 : i32
    %c0_i32_1 = arith.constant 0 : i32
    return %c0_i32, %c0_i32_0 : i32, i32
  }
  func.func @transform_2(%arg0: i32) -> (i32, i32) {
    %c0_i32 = arith.constant 0 : i32
    %c0_i32_0 = arith.constant 0 : i32
    %c0_i32_1 = arith.constant 0 : i32
    return %c0_i32, %c0_i32_0 : i32, i32
  }
  func.func @transform_3(%arg0: i32) -> (i32, i32) {
    %c0_i32 = arith.constant 0 : i32
    %c0_i32_0 = arith.constant 0 : i32
    %c0_i32_1 = arith.constant 0 : i32
    return %c0_i32, %c0_i32_0 : i32, i32
  }
  func.func @transform_4(%arg0: i32) -> (i32, i32) {
    %c0_i32 = arith.constant 0 : i32
    %c0_i32_0 = arith.constant 0 : i32
    %c0_i32_1 = arith.constant 0 : i32
    return %c0_i32, %c0_i32_0 : i32, i32
  }
  func.func @transform_5(%arg0: i32) -> (i32, i32) {
    %c0_i32 = arith.constant 0 : i32
    %c0_i32_0 = arith.constant 0 : i32
    %c0_i32_1 = arith.constant 0 : i32
    return %c0_i32, %c0_i32_0 : i32, i32
  }
  func.func @transform_6(%arg0: i32) -> (i32, i32) {
    %c0_i32 = arith.constant 0 : i32
    %c0_i32_0 = arith.constant 0 : i32
    %c0_i32_1 = arith.constant 0 : i32
    return %c0_i32, %c0_i32_0 : i32, i32
  }
  func.func @transform_7(%arg0: i32) -> (i32, i32) {
    %c0_i32 = arith.constant 0 : i32
    %c0_i32_0 = arith.constant 0 : i32
    %c0_i32_1 = arith.constant 0 : i32
    return %c0_i32, %c0_i32_0 : i32, i32
  }
  func.func @transform_8(%arg0: i32) -> (i32, i32) {
    %c0_i32 = arith.constant 0 : i32
    %c0_i32_0 = arith.constant 0 : i32
    %c0_i32_1 = arith.constant 0 : i32
    return %c0_i32, %c0_i32_0 : i32, i32
  }
  func.func @transform_9(%arg0: i32) -> (i32, i32) {
    %c0_i32 = arith.constant 0 : i32
    %c0_i32_0 = arith.constant 0 : i32
    return %c0_i32, %arg0 : i32, i32
  }
}

</mosaic_0001>

<llo_original>
// kernel: simple_linear_model.1
$region0: #{simple_linear_model.1}
  #allocation0 [shape = 'u32[]', space=smem, size = 0x4, offset = 0x4, fixed_abs, tag = 'smem constant byte address 0x4 - core index']
  #allocation1 [shape = 'u32[144,128]{1,0:T(1,128)}', space=vmem, size = 0x12000, scoped, tag = 'internal scratch']
  %s0 = inlined_call_operand.vmem [shape: f32[8,16], index: 0, kind: input, shape index: {}]
  %s1 = inlined_call_operand.vmem [shape: bf16[64,16], index: 1, kind: input, shape index: {}]
  %s2 = inlined_call_operand.vmem [shape: f32[64,1], index: 2, kind: input, shape index: {}]
  %s3 = inlined_call_operand.vmem [shape: bf16[128,64], index: 3, kind: input, shape index: {}]
  %s4 = inlined_call_operand.vmem [shape: f32[128,1], index: 4, kind: input, shape index: {}]
  %s5 = inlined_call_operand.vmem [shape: bf16[128,128], index: 5, kind: input, shape index: {}]
  %s6 = inlined_call_operand.vmem [shape: f32[128,1], index: 6, kind: input, shape index: {}]
  %s7 = inlined_call_operand.vmem [shape: bf16[4,128], index: 7, kind: input, shape index: {}]
  %s8 = inlined_call_operand.vmem [shape: f32[4,1], index: 8, kind: input, shape index: {}]
  %s9 = inlined_call_operand.hbm [shape: f32[4,8], index: 9, kind: output, shape index: {}]
  %s10 = sld [smem:[#allocation0]]
  $region46: #{simple_linear_model.1} parent=0
    _
  %s12 = ssub.s32 1, %s10
  %s13 = scalar_select 0, %s12, %s10
  $region1: #{simple_linear_model.1} parent=0
    #allocation2 [shape = 'u8[2048]{0}', space=vmem, size = 0x800, scoped, tag = 'output window, operand 0, single buffered']
    #allocation3 [shape = 's32[1]{0}', space=sflag, size = 0x4, scoped, tag = 'scoped memory for simple_linear_model.1']
    %14 = vsyncpa [#allocation3], 0
    // Predicated region
    $region2: #{simple_linear_model.1} parent=1 // pred_check
      _
    $region3: #{simple_linear_model.1} parent=1 // pred_check_branch
      %16 = sbr.rel (0) target = $region5
    $region4: #{simple_linear_model.1} parent=1 // pred_region
      _
    $region5: #{simple_linear_model.1} parent=1 // pred_fallthru
      _
    // Predicated region
    $region6: #{simple_linear_model.1} parent=1 // pred_check
      _
    $region7: #{simple_linear_model.1} parent=1 // pred_check_branch
      %18 = sbr.rel (0) target = $region9
    $region8: #{simple_linear_model.1} parent=1 // pred_region
      _
    $region9: #{simple_linear_model.1} parent=1 // pred_fallthru
      _
    // Predicated region
    $region10: #{simple_linear_model.1} parent=1 // pred_check
      _
    $region11: #{simple_linear_model.1} parent=1 // pred_check_branch
      %20 = sbr.rel (0) target = $region13
    $region12: #{simple_linear_model.1} parent=1 // pred_region
      _
    $region13: #{simple_linear_model.1} parent=1 // pred_fallthru
      _
    // Predicated region
    $region14: #{simple_linear_model.1} parent=1 // pred_check
      _
    $region15: #{simple_linear_model.1} parent=1 // pred_check_branch
      %22 = sbr.rel (0) target = $region17
    $region16: #{simple_linear_model.1} parent=1 // pred_region
      _
    $region17: #{simple_linear_model.1} parent=1 // pred_fallthru
      _
    // Predicated region
    $region18: #{simple_linear_model.1} parent=1 // pred_check
      _
    $region19: #{simple_linear_model.1} parent=1 // pred_check_branch
      %24 = sbr.rel (0) target = $region21
    $region20: #{simple_linear_model.1} parent=1 // pred_region
      _
    $region21: #{simple_linear_model.1} parent=1 // pred_fallthru
      _
    // Predicated region
    $region22: #{simple_linear_model.1} parent=1 // pred_check
      _
    $region23: #{simple_linear_model.1} parent=1 // pred_check_branch
      %26 = sbr.rel (0) target = $region25
    $region24: #{simple_linear_model.1} parent=1 // pred_region
      _
    $region25: #{simple_linear_model.1} parent=1 // pred_fallthru
      _
    // Predicated region
    $region26: #{simple_linear_model.1} parent=1 // pred_check
      _
    $region27: #{simple_linear_model.1} parent=1 // pred_check_branch
      %28 = sbr.rel (0) target = $region29
    $region28: #{simple_linear_model.1} parent=1 // pred_region
      _
    $region29: #{simple_linear_model.1} parent=1 // pred_fallthru
      _
    // Predicated region
    $region30: #{simple_linear_model.1} parent=1 // pred_check
      _
    $region31: #{simple_linear_model.1} parent=1 // pred_check_branch
      %30 = sbr.rel (0) target = $region33
    $region32: #{simple_linear_model.1} parent=1 // pred_region
      _
    $region33: #{simple_linear_model.1} parent=1 // pred_fallthru
      _
    // Predicated region
    $region34: #{simple_linear_model.1} parent=1 // pred_check
      _
    $region35: #{simple_linear_model.1} parent=1 // pred_check_branch
      %32 = sbr.rel (0) target = $region37
    $region36: #{simple_linear_model.1} parent=1 // pred_region
      _
    $region37: #{simple_linear_model.1} parent=1 // pred_fallthru
      _
    %v34 = vld [vmem:[%s0] sm:$0xff]
    %v35 = vld [vmem:[%s0 + $0x8] sm:$0xff]
    %v36 = vld [vmem:[%s0 + $0x10] sm:$0xff]
    %v37 = vld [vmem:[%s0 + $0x18] sm:$0xff]
    %v38 = vld [vmem:[%s0 + $0x20] sm:$0xff]
    %v39 = vld [vmem:[%s0 + $0x28] sm:$0xff]
    %v40 = vld [vmem:[%s0 + $0x30] sm:$0xff]
    %v41 = vld [vmem:[%s0 + $0x38] sm:$0xff]
    %v42 = vld [vmem:[%s0 + $0x40] sm:$0xff]
    %v43 = vld [vmem:[%s0 + $0x48] sm:$0xff]
    %v44 = vld [vmem:[%s0 + $0x50] sm:$0xff]
    %v45 = vld [vmem:[%s0 + $0x58] sm:$0xff]
    %v46 = vld [vmem:[%s0 + $0x60] sm:$0xff]
    %v47 = vld [vmem:[%s0 + $0x68] sm:$0xff]
    %v48 = vld [vmem:[%s0 + $0x70] sm:$0xff]
    %v49 = vld [vmem:[%s0 + $0x78] sm:$0xff]
    %v50 = vpack.c.bf16 %v35, %v34
    %v51 = vpack.c.bf16 %v37, %v36
    %v52 = vpack.c.bf16 %v39, %v38
    %v53 = vpack.c.bf16 %v41, %v40
    %v54 = vpack.c.bf16 %v43, %v42
    %v55 = vpack.c.bf16 %v45, %v44
    %v56 = vpack.c.bf16 %v47, %v46
    %v57 = vpack.c.bf16 %v49, %v48
    %v58 = vld [vmem:[%s1] sm:$0xf]
    %v59 = vld [vmem:[%s1 + $0x4] sm:$0xf]
    %v60 = vld [vmem:[%s1 + $0x8] sm:$0xf]
    %v61 = vld [vmem:[%s1 + $0xc] sm:$0xf]
    %v62 = vld [vmem:[%s1 + $0x10] sm:$0xf]
    %v63 = vld [vmem:[%s1 + $0x14] sm:$0xf]
    %v64 = vld [vmem:[%s1 + $0x18] sm:$0xf]
    %v65 = vld [vmem:[%s1 + $0x1c] sm:$0xf]
    %v66 = vld [vmem:[%s2] sm:$0xff]
    %v67 = vld [vmem:[%s2 + $0x8] sm:$0xff]
    %v68 = vld [vmem:[%s2 + $0x10] sm:$0xff]
    %v69 = vld [vmem:[%s2 + $0x18] sm:$0xff]
    %v70 = vld [vmem:[%s2 + $0x20] sm:$0xff]
    %v71 = vld [vmem:[%s2 + $0x28] sm:$0xff]
    %v72 = vld [vmem:[%s2 + $0x30] sm:$0xff]
    %v73 = vld [vmem:[%s2 + $0x38] sm:$0xff]
    %75 = vset.pattern.permute.xlu0 0
    %76 = vperm.xlu0 %75, %v66
    %v77 = vpop.permute.xlu0 %76
    %80 = vset.pattern.permute.xlu0 0
    %81 = vperm.xlu0 %80, %v67
    %v82 = vpop.permute.xlu0 %81
    %85 = vset.pattern.permute.xlu0 0
    %86 = vperm.xlu0 %85, %v68
    %v87 = vpop.permute.xlu0 %86
    %90 = vset.pattern.permute.xlu0 0
    %91 = vperm.xlu0 %90, %v69
    %v92 = vpop.permute.xlu0 %91
    %95 = vset.pattern.permute.xlu0 0
    %96 = vperm.xlu0 %95, %v70
    %v97 = vpop.permute.xlu0 %96
    %100 = vset.pattern.permute.xlu0 0
    %101 = vperm.xlu0 %100, %v71
    %v102 = vpop.permute.xlu0 %101
    %105 = vset.pattern.permute.xlu0 0
    %106 = vperm.xlu0 %105, %v72
    %v107 = vpop.permute.xlu0 %106
    %110 = vset.pattern.permute.xlu0 0
    %111 = vperm.xlu0 %110, %v73
    %v112 = vpop.permute.xlu0 %111
    %v122 = vunpack.c.l.b16 %v58
    %v123 = vunpack.c.l.b16 %v59
    %v124 = vunpack.c.l.b16 %v60
    %v125 = vunpack.c.l.b16 %v61
    %v126 = vunpack.c.l.b16 %v62
    %v127 = vunpack.c.l.b16 %v63
    %v128 = vunpack.c.l.b16 %v64
    %v129 = vunpack.c.l.b16 %v65
    %v130 = vpack.c.b16 %v123, %v122
    %v131 = vpack.c.b16 %v125, %v124
    %v132 = vpack.c.b16 %v127, %v126
    %v133 = vpack.c.b16 %v129, %v128
    %vm134 = vcmask 130048
    %v136 = vsel %vm134, %v130, 0
    %v139 = vsel %vm134, %v131, 0
    %v142 = vsel %vm134, %v132, 0
    %v145 = vsel %vm134, %v133, 0
    %v148 = vsel %vm134, %v50, 0
    %v151 = vsel %vm134, %v51, 0
    %v154 = vsel %vm134, %v52, 0
    %v157 = vsel %vm134, %v53, 0
    %v160 = vsel %vm134, %v54, 0
    %v163 = vsel %vm134, %v55, 0
    %v166 = vsel %vm134, %v56, 0
    %v169 = vsel %vm134, %v57, 0
    %171 = vmatprep.subr.bf16.mxu0 0
    %172 = vmatpush1.bf16.xpose.msra.mxu0 %v169
    %173 = vmatprep.subr.bf16.mxu0 0
    %174 = vmatpush1.bf16.xpose.msra.mxu0 %v166
    %175 = vmatprep.subr.bf16.mxu0 0
    %176 = vmatpush1.bf16.xpose.msra.mxu0 %v163
    %177 = vmatprep.subr.bf16.mxu0 0
    %178 = vmatpush1.bf16.xpose.msra.mxu0 %v160
    %179 = vmatprep.subr.bf16.mxu0 0
    %180 = vmatpush1.bf16.xpose.msra.mxu0 %v157
    %181 = vmatprep.subr.bf16.mxu0 0
    %182 = vmatpush1.bf16.xpose.msra.mxu0 %v154
    %183 = vmatprep.subr.bf16.mxu0 0
    %184 = vmatpush1.bf16.xpose.msra.mxu0 %v151
    %185 = vmatprep.subr.bf16.mxu0 0
    %186 = vmatpush1.bf16.xpose.msra.mxu0 %v148
    %187 = vmatprep.subr.bf16.mxu0 0
    %188 = vmatpush2.bf16.xpose.msra.mxu0 0
    %189 = vmatprep.subr.bf16.mxu0 0
    %190 = vmatpush2.bf16.xpose.msra.mxu0 0
    %191 = vmatprep.subr.bf16.mxu0 0
    %192 = vmatpush2.bf16.xpose.msra.mxu0 0
    %193 = vmatprep.subr.bf16.mxu0 0
    %194 = vmatpush2.bf16.xpose.msra.mxu0 0
    %195 = vmatprep.subr.bf16.mxu0 0
    %196 = vmatpush2.bf16.xpose.msra.mxu0 0
    %197 = vmatprep.subr.bf16.mxu0 0
    %198 = vmatpush2.bf16.xpose.msra.mxu0 0
    %199 = vmatprep.subr.bf16.mxu0 0
    %200 = vmatpush2.bf16.xpose.msra.mxu0 0
    %201 = vmatprep.subr.bf16.mxu0 0
    %202 = vmatpush2.bf16.xpose.msra.mxu0 0
    %203 = vmatprep.mubr.bf16.mxu0 0
    %204 = vmatmul.mubr.bf16.gmra.mxu0 %v136
    %v205 = vpop.f32.mrf.mxu0
    %v206 = vadd.f32 %v77, %v205
    %v207 = vpop.f32.mrf.mxu0
    %v208 = vpop.f32.mrf.mxu0
    %v209 = vadd.f32 %v82, %v208
    %v210 = vpop.f32.mrf.mxu0
    %211 = vmatprep.mubr.bf16.mxu0 0
    %212 = vmatmul.mubr.bf16.gmra.mxu0 %v139
    %v213 = vpop.f32.mrf.mxu0
    %v214 = vadd.f32 %v87, %v213
    %v215 = vpop.f32.mrf.mxu0
    %v216 = vpop.f32.mrf.mxu0
    %v217 = vadd.f32 %v92, %v216
    %v218 = vpop.f32.mrf.mxu0
    %219 = vmatprep.mubr.bf16.mxu0 0
    %220 = vmatmul.mubr.bf16.gmra.mxu0 %v142
    %v221 = vpop.f32.mrf.mxu0
    %v222 = vadd.f32 %v97, %v221
    %v223 = vpop.f32.mrf.mxu0
    %v224 = vpop.f32.mrf.mxu0
    %v225 = vadd.f32 %v102, %v224
    %v226 = vpop.f32.mrf.mxu0
    %227 = vmatprep.mubr.bf16.mxu0 0
    %228 = vmatmul.mubr.bf16.gmra.mxu0 %v145
    %v229 = vpop.f32.mrf.mxu0
    %v230 = vadd.f32 %v107, %v229
    %v231 = vpop.f32.mrf.mxu0
    %v232 = vpop.f32.mrf.mxu0
    %v233 = vadd.f32 %v112, %v232
    %v234 = vpop.f32.mrf.mxu0
    %235 = vdwg.mxu0
    %v236 = vmax.f32 %v206, 0.0
    %v237 = vmax.f32 %v209, 0.0
    %v238 = vmax.f32 %v214, 0.0
    %v239 = vmax.f32 %v217, 0.0
    %v240 = vmax.f32 %v222, 0.0
    %v241 = vmax.f32 %v225, 0.0
    %v242 = vmax.f32 %v230, 0.0
    %v243 = vmax.f32 %v233, 0.0
    %v244 = vmin.f32 %v236, 6.0
    %v245 = vmin.f32 %v237, 6.0
    %v246 = vmin.f32 %v238, 6.0
    %v247 = vmin.f32 %v239, 6.0
    %v248 = vmin.f32 %v240, 6.0
    %v249 = vmin.f32 %v241, 6.0
    %v250 = vmin.f32 %v242, 6.0
    %v251 = vmin.f32 %v243, 6.0
    %v252 = vpack.c.bf16 %v245, %v244
    %v253 = vpack.c.bf16 %v247, %v246
    %v254 = vpack.c.bf16 %v249, %v248
    %v255 = vpack.c.bf16 %v251, %v250
    %v256 = vld [vmem:[%s3] sm:$0xf]
    %v257 = vld [vmem:[%s3 + $0x4] sm:$0xf]
    %v258 = vld [vmem:[%s3 + $0x8] sm:$0xf]
    %v259 = vld [vmem:[%s3 + $0xc] sm:$0xf]
    %v260 = vld [vmem:[%s3 + $0x10] sm:$0xf]
    %v261 = vld [vmem:[%s3 + $0x14] sm:$0xf]
    %v262 = vld [vmem:[%s3 + $0x18] sm:$0xf]
    %v263 = vld [vmem:[%s3 + $0x1c] sm:$0xf]
    %v264 = vld [vmem:[%s3 + $0x20] sm:$0xf]
    %v265 = vld [vmem:[%s3 + $0x24] sm:$0xf]
    %v266 = vld [vmem:[%s3 + $0x28] sm:$0xf]
    %v267 = vld [vmem:[%s3 + $0x2c] sm:$0xf]
    %v268 = vld [vmem:[%s3 + $0x30] sm:$0xf]
    %v269 = vld [vmem:[%s3 + $0x34] sm:$0xf]
    %v270 = vld [vmem:[%s3 + $0x38] sm:$0xf]
    %v271 = vld [vmem:[%s3 + $0x3c] sm:$0xf]
    %v272 = vld [vmem:[%s4] sm:$0xff]
    %v273 = vld [vmem:[%s4 + $0x8] sm:$0xff]
    %v274 = vld [vmem:[%s4 + $0x10] sm:$0xff]
    %v275 = vld [vmem:[%s4 + $0x18] sm:$0xff]
    %v276 = vld [vmem:[%s4 + $0x20] sm:$0xff]
    %v277 = vld [vmem:[%s4 + $0x28] sm:$0xff]
    %v278 = vld [vmem:[%s4 + $0x30] sm:$0xff]
    %v279 = vld [vmem:[%s4 + $0x38] sm:$0xff]
    %v280 = vld [vmem:[%s4 + $0x40] sm:$0xff]
    %v281 = vld [vmem:[%s4 + $0x48] sm:$0xff]
    %v282 = vld [vmem:[%s4 + $0x50] sm:$0xff]
    %v283 = vld [vmem:[%s4 + $0x58] sm:$0xff]
    %v284 = vld [vmem:[%s4 + $0x60] sm:$0xff]
    %v285 = vld [vmem:[%s4 + $0x68] sm:$0xff]
    %v286 = vld [vmem:[%s4 + $0x70] sm:$0xff]
    %v287 = vld [vmem:[%s4 + $0x78] sm:$0xff]
    %289 = vset.pattern.permute.xlu0 0
    %290 = vperm.xlu0 %289, %v272
    %v291 = vpop.permute.xlu0 %290
    %294 = vset.pattern.permute.xlu0 0
    %295 = vperm.xlu0 %294, %v273
    %v296 = vpop.permute.xlu0 %295
    %299 = vset.pattern.permute.xlu0 0
    %300 = vperm.xlu0 %299, %v274
    %v301 = vpop.permute.xlu0 %300
    %304 = vset.pattern.permute.xlu0 0
    %305 = vperm.xlu0 %304, %v275
    %v306 = vpop.permute.xlu0 %305
    %309 = vset.pattern.permute.xlu0 0
    %310 = vperm.xlu0 %309, %v276
    %v311 = vpop.permute.xlu0 %310
    %314 = vset.pattern.permute.xlu0 0
    %315 = vperm.xlu0 %314, %v277
    %v316 = vpop.permute.xlu0 %315
    %319 = vset.pattern.permute.xlu0 0
    %320 = vperm.xlu0 %319, %v278
    %v321 = vpop.permute.xlu0 %320
    %324 = vset.pattern.permute.xlu0 0
    %325 = vperm.xlu0 %324, %v279
    %v326 = vpop.permute.xlu0 %325
    %329 = vset.pattern.permute.xlu0 0
    %330 = vperm.xlu0 %329, %v280
    %v331 = vpop.permute.xlu0 %330
    %334 = vset.pattern.permute.xlu0 0
    %335 = vperm.xlu0 %334, %v281
    %v336 = vpop.permute.xlu0 %335
    %339 = vset.pattern.permute.xlu0 0
    %340 = vperm.xlu0 %339, %v282
    %v341 = vpop.permute.xlu0 %340
    %344 = vset.pattern.permute.xlu0 0
    %345 = vperm.xlu0 %344, %v283
    %v346 = vpop.permute.xlu0 %345
    %349 = vset.pattern.permute.xlu0 0
    %350 = vperm.xlu0 %349, %v284
    %v351 = vpop.permute.xlu0 %350
    %354 = vset.pattern.permute.xlu0 0
    %355 = vperm.xlu0 %354, %v285
    %v356 = vpop.permute.xlu0 %355
    %359 = vset.pattern.permute.xlu0 0
    %360 = vperm.xlu0 %359, %v286
    %v361 = vpop.permute.xlu0 %360
    %364 = vset.pattern.permute.xlu0 0
    %365 = vperm.xlu0 %364, %v287
    %v366 = vpop.permute.xlu0 %365
    %v384 = vunpack.c.l.b16 %v256
    %v385 = vunpack.c.l.b16 %v257
    %v386 = vunpack.c.l.b16 %v258
    %v387 = vunpack.c.l.b16 %v259
    %v388 = vunpack.c.l.b16 %v260
    %v389 = vunpack.c.l.b16 %v261
    %v390 = vunpack.c.l.b16 %v262
    %v391 = vunpack.c.l.b16 %v263
    %v392 = vunpack.c.l.b16 %v264
    %v393 = vunpack.c.l.b16 %v265
    %v394 = vunpack.c.l.b16 %v266
    %v395 = vunpack.c.l.b16 %v267
    %v396 = vunpack.c.l.b16 %v268
    %v397 = vunpack.c.l.b16 %v269
    %v398 = vunpack.c.l.b16 %v270
    %v399 = vunpack.c.l.b16 %v271
    %v400 = vpack.c.b16 %v385, %v384
    %v401 = vpack.c.b16 %v387, %v386
    %v402 = vpack.c.b16 %v389, %v388
    %v403 = vpack.c.b16 %v391, %v390
    %v404 = vpack.c.b16 %v393, %v392
    %v405 = vpack.c.b16 %v395, %v394
    %v406 = vpack.c.b16 %v397, %v396
    %v407 = vpack.c.b16 %v399, %v398
    %vm408 = vcmask 523264
    %v410 = vsel %vm408, %v400, 0
    %v413 = vsel %vm408, %v401, 0
    %v416 = vsel %vm408, %v402, 0
    %v419 = vsel %vm408, %v403, 0
    %v422 = vsel %vm408, %v404, 0
    %v425 = vsel %vm408, %v405, 0
    %v428 = vsel %vm408, %v406, 0
    %v431 = vsel %vm408, %v407, 0
    %433 = vmatprep.subr.bf16.mxu0 0
    %434 = vmatpush1.bf16.msra.mxu0 0
    %435 = vmatprep.subr.bf16.mxu0 0
    %436 = vmatpush1.bf16.msra.mxu0 0
    %437 = vmatprep.subr.bf16.mxu0 0
    %438 = vmatpush1.bf16.msra.mxu0 0
    %439 = vmatprep.subr.bf16.mxu0 0
    %440 = vmatpush1.bf16.msra.mxu0 0
    %441 = vmatprep.subr.bf16.mxu0 0
    %442 = vmatpush1.bf16.msra.mxu0 %v255
    %443 = vmatprep.subr.bf16.mxu0 0
    %444 = vmatpush1.bf16.msra.mxu0 %v254
    %445 = vmatprep.subr.bf16.mxu0 0
    %446 = vmatpush1.bf16.msra.mxu0 %v253
    %447 = vmatprep.subr.bf16.mxu0 0
    %448 = vmatpush1.bf16.msra.mxu0 %v252
    %449 = vmatprep.subr.bf16.mxu0 0
    %450 = vmatpush2.bf16.msra.mxu0 0
    %451 = vmatprep.subr.bf16.mxu0 0
    %452 = vmatpush2.bf16.msra.mxu0 0
    %453 = vmatprep.subr.bf16.mxu0 0
    %454 = vmatpush2.bf16.msra.mxu0 0
    %455 = vmatprep.subr.bf16.mxu0 0
    %456 = vmatpush2.bf16.msra.mxu0 0
    %457 = vmatprep.subr.bf16.mxu0 0
    %458 = vmatpush2.bf16.msra.mxu0 0
    %459 = vmatprep.subr.bf16.mxu0 0
    %460 = vmatpush2.bf16.msra.mxu0 0
    %461 = vmatprep.subr.bf16.mxu0 0
    %462 = vmatpush2.bf16.msra.mxu0 0
    %463 = vmatprep.subr.bf16.mxu0 0
    %464 = vmatpush2.bf16.msra.mxu0 0
    %465 = vmatprep.mubr.bf16.mxu0 0
    %466 = vmatmul.mubr.bf16.gmra.mxu0 %v410
    %v467 = vpop.f32.mrf.mxu0
    %v468 = vadd.f32 %v291, %v467
    %v469 = vpop.f32.mrf.mxu0
    %v470 = vpop.f32.mrf.mxu0
    %v471 = vadd.f32 %v296, %v470
    %v472 = vpop.f32.mrf.mxu0
    %473 = vmatprep.mubr.bf16.mxu0 0
    %474 = vmatmul.mubr.bf16.gmra.mxu0 %v413
    %v475 = vpop.f32.mrf.mxu0
    %v476 = vadd.f32 %v301, %v475
    %v477 = vpop.f32.mrf.mxu0
    %v478 = vpop.f32.mrf.mxu0
    %v479 = vadd.f32 %v306, %v478
    %v480 = vpop.f32.mrf.mxu0
    %481 = vmatprep.mubr.bf16.mxu0 0
    %482 = vmatmul.mubr.bf16.gmra.mxu0 %v416
    %v483 = vpop.f32.mrf.mxu0
    %v484 = vadd.f32 %v311, %v483
    %v485 = vpop.f32.mrf.mxu0
    %v486 = vpop.f32.mrf.mxu0
    %v487 = vadd.f32 %v316, %v486
    %v488 = vpop.f32.mrf.mxu0
    %489 = vmatprep.mubr.bf16.mxu0 0
    %490 = vmatmul.mubr.bf16.gmra.mxu0 %v419
    %v491 = vpop.f32.mrf.mxu0
    %v492 = vadd.f32 %v321, %v491
    %v493 = vpop.f32.mrf.mxu0
    %v494 = vpop.f32.mrf.mxu0
    %v495 = vadd.f32 %v326, %v494
    %v496 = vpop.f32.mrf.mxu0
    %497 = vmatprep.mubr.bf16.mxu0 0
    %498 = vmatmul.mubr.bf16.gmra.mxu0 %v422
    %v499 = vpop.f32.mrf.mxu0
    %v500 = vadd.f32 %v331, %v499
    %v501 = vpop.f32.mrf.mxu0
    %v502 = vpop.f32.mrf.mxu0
    %v503 = vadd.f32 %v336, %v502
    %v504 = vpop.f32.mrf.mxu0
    %505 = vmatprep.mubr.bf16.mxu0 0
    %506 = vmatmul.mubr.bf16.gmra.mxu0 %v425
    %v507 = vpop.f32.mrf.mxu0
    %v508 = vadd.f32 %v341, %v507
    %v509 = vpop.f32.mrf.mxu0
    %v510 = vpop.f32.mrf.mxu0
    %v511 = vadd.f32 %v346, %v510
    %v512 = vpop.f32.mrf.mxu0
    %513 = vmatprep.mubr.bf16.mxu0 0
    %514 = vmatmul.mubr.bf16.gmra.mxu0 %v428
    %v515 = vpop.f32.mrf.mxu0
    %v516 = vadd.f32 %v351, %v515
    %v517 = vpop.f32.mrf.mxu0
    %v518 = vpop.f32.mrf.mxu0
    %v519 = vadd.f32 %v356, %v518
    %v520 = vpop.f32.mrf.mxu0
    %521 = vmatprep.mubr.bf16.mxu0 0
    %522 = vmatmul.mubr.bf16.gmra.mxu0 %v431
    %v523 = vpop.f32.mrf.mxu0
    %v524 = vadd.f32 %v361, %v523
    %v525 = vpop.f32.mrf.mxu0
    %v526 = vpop.f32.mrf.mxu0
    %v527 = vadd.f32 %v366, %v526
    %v528 = vpop.f32.mrf.mxu0
    %529 = vdwg.mxu0
    %v530 = vmax.f32 %v468, 0.0
    %v531 = vmax.f32 %v471, 0.0
    %v532 = vmax.f32 %v476, 0.0
    %v533 = vmax.f32 %v479, 0.0
    %v534 = vmax.f32 %v484, 0.0
    %v535 = vmax.f32 %v487, 0.0
    %v536 = vmax.f32 %v492, 0.0
    %v537 = vmax.f32 %v495, 0.0
    %v538 = vmax.f32 %v500, 0.0
    %v539 = vmax.f32 %v503, 0.0
    %v540 = vmax.f32 %v508, 0.0
    %v541 = vmax.f32 %v511, 0.0
    %v542 = vmax.f32 %v516, 0.0
    %v543 = vmax.f32 %v519, 0.0
    %v544 = vmax.f32 %v524, 0.0
    %v545 = vmax.f32 %v527, 0.0
    %v546 = vmin.f32 %v530, 6.0
    %v547 = vmin.f32 %v531, 6.0
    %v548 = vmin.f32 %v532, 6.0
    %v549 = vmin.f32 %v533, 6.0
    %v550 = vmin.f32 %v534, 6.0
    %v551 = vmin.f32 %v535, 6.0
    %v552 = vmin.f32 %v536, 6.0
    %v553 = vmin.f32 %v537, 6.0
    %v554 = vmin.f32 %v538, 6.0
    %v555 = vmin.f32 %v539, 6.0
    %v556 = vmin.f32 %v540, 6.0
    %v557 = vmin.f32 %v541, 6.0
    %v558 = vmin.f32 %v542, 6.0
    %v559 = vmin.f32 %v543, 6.0
    %v560 = vmin.f32 %v544, 6.0
    %v561 = vmin.f32 %v545, 6.0
    %v562 = vpack.c.bf16 %v547, %v546
    %v563 = vpack.c.bf16 %v549, %v548
    %v564 = vpack.c.bf16 %v551, %v550
    %v565 = vpack.c.bf16 %v553, %v552
    %v566 = vpack.c.bf16 %v555, %v554
    %v567 = vpack.c.bf16 %v557, %v556
    %v568 = vpack.c.bf16 %v559, %v558
    %v569 = vpack.c.bf16 %v561, %v560
    %v570 = vld [vmem:[%s5] sm:$0xf]
    %v571 = vld [vmem:[%s5 + $0x4] sm:$0xf]
    %v572 = vld [vmem:[%s5 + $0x8] sm:$0xf]
    %v573 = vld [vmem:[%s5 + $0xc] sm:$0xf]
    %v574 = vld [vmem:[%s5 + $0x10] sm:$0xf]
    %v575 = vld [vmem:[%s5 + $0x14] sm:$0xf]
    %v576 = vld [vmem:[%s5 + $0x18] sm:$0xf]
    %v577 = vld [vmem:[%s5 + $0x1c] sm:$0xf]
    %v578 = vld [vmem:[%s5 + $0x20] sm:$0xf]
    %v579 = vld [vmem:[%s5 + $0x24] sm:$0xf]
    %v580 = vld [vmem:[%s5 + $0x28] sm:$0xf]
    %v581 = vld [vmem:[%s5 + $0x2c] sm:$0xf]
    %v582 = vld [vmem:[%s5 + $0x30] sm:$0xf]
    %v583 = vld [vmem:[%s5 + $0x34] sm:$0xf]
    %v584 = vld [vmem:[%s5 + $0x38] sm:$0xf]
    %v585 = vld [vmem:[%s5 + $0x3c] sm:$0xf]
    %v586 = vld [vmem:[%s6] sm:$0xff]
    %v587 = vld [vmem:[%s6 + $0x8] sm:$0xff]
    %v588 = vld [vmem:[%s6 + $0x10] sm:$0xff]
    %v589 = vld [vmem:[%s6 + $0x18] sm:$0xff]
    %v590 = vld [vmem:[%s6 + $0x20] sm:$0xff]
    %v591 = vld [vmem:[%s6 + $0x28] sm:$0xff]
    %v592 = vld [vmem:[%s6 + $0x30] sm:$0xff]
    %v593 = vld [vmem:[%s6 + $0x38] sm:$0xff]
    %v594 = vld [vmem:[%s6 + $0x40] sm:$0xff]
    %v595 = vld [vmem:[%s6 + $0x48] sm:$0xff]
    %v596 = vld [vmem:[%s6 + $0x50] sm:$0xff]
    %v597 = vld [vmem:[%s6 + $0x58] sm:$0xff]
    %v598 = vld [vmem:[%s6 + $0x60] sm:$0xff]
    %v599 = vld [vmem:[%s6 + $0x68] sm:$0xff]
    %v600 = vld [vmem:[%s6 + $0x70] sm:$0xff]
    %v601 = vld [vmem:[%s6 + $0x78] sm:$0xff]
    %603 = vset.pattern.permute.xlu0 0
    %604 = vperm.xlu0 %603, %v586
    %v605 = vpop.permute.xlu0 %604
    %608 = vset.pattern.permute.xlu0 0
    %609 = vperm.xlu0 %608, %v587
    %v610 = vpop.permute.xlu0 %609
    %613 = vset.pattern.permute.xlu0 0
    %614 = vperm.xlu0 %613, %v588
    %v615 = vpop.permute.xlu0 %614
    %618 = vset.pattern.permute.xlu0 0
    %619 = vperm.xlu0 %618, %v589
    %v620 = vpop.permute.xlu0 %619
    %623 = vset.pattern.permute.xlu0 0
    %624 = vperm.xlu0 %623, %v590
    %v625 = vpop.permute.xlu0 %624
    %628 = vset.pattern.permute.xlu0 0
    %629 = vperm.xlu0 %628, %v591
    %v630 = vpop.permute.xlu0 %629
    %633 = vset.pattern.permute.xlu0 0
    %634 = vperm.xlu0 %633, %v592
    %v635 = vpop.permute.xlu0 %634
    %638 = vset.pattern.permute.xlu0 0
    %639 = vperm.xlu0 %638, %v593
    %v640 = vpop.permute.xlu0 %639
    %643 = vset.pattern.permute.xlu0 0
    %644 = vperm.xlu0 %643, %v594
    %v645 = vpop.permute.xlu0 %644
    %648 = vset.pattern.permute.xlu0 0
    %649 = vperm.xlu0 %648, %v595
    %v650 = vpop.permute.xlu0 %649
    %653 = vset.pattern.permute.xlu0 0
    %654 = vperm.xlu0 %653, %v596
    %v655 = vpop.permute.xlu0 %654
    %658 = vset.pattern.permute.xlu0 0
    %659 = vperm.xlu0 %658, %v597
    %v660 = vpop.permute.xlu0 %659
    %663 = vset.pattern.permute.xlu0 0
    %664 = vperm.xlu0 %663, %v598
    %v665 = vpop.permute.xlu0 %664
    %668 = vset.pattern.permute.xlu0 0
    %669 = vperm.xlu0 %668, %v599
    %v670 = vpop.permute.xlu0 %669
    %673 = vset.pattern.permute.xlu0 0
    %674 = vperm.xlu0 %673, %v600
    %v675 = vpop.permute.xlu0 %674
    %678 = vset.pattern.permute.xlu0 0
    %679 = vperm.xlu0 %678, %v601
    %v680 = vpop.permute.xlu0 %679
    %v698 = vunpack.c.l.b16 %v570
    %v699 = vunpack.c.l.b16 %v571
    %v700 = vunpack.c.l.b16 %v572
    %v701 = vunpack.c.l.b16 %v573
    %v702 = vunpack.c.l.b16 %v574
    %v703 = vunpack.c.l.b16 %v575
    %v704 = vunpack.c.l.b16 %v576
    %v705 = vunpack.c.l.b16 %v577
    %v706 = vunpack.c.l.b16 %v578
    %v707 = vunpack.c.l.b16 %v579
    %v708 = vunpack.c.l.b16 %v580
    %v709 = vunpack.c.l.b16 %v581
    %v710 = vunpack.c.l.b16 %v582
    %v711 = vunpack.c.l.b16 %v583
    %v712 = vunpack.c.l.b16 %v584
    %v713 = vunpack.c.l.b16 %v585
    %v714 = vpack.c.b16 %v699, %v698
    %v715 = vpack.c.b16 %v701, %v700
    %v716 = vpack.c.b16 %v703, %v702
    %v717 = vpack.c.b16 %v705, %v704
    %v718 = vpack.c.b16 %v707, %v706
    %v719 = vpack.c.b16 %v709, %v708
    %v720 = vpack.c.b16 %v711, %v710
    %v721 = vpack.c.b16 %v713, %v712
    %730 = vmatprep.subr.bf16.mxu0 0
    %731 = vmatpush1.bf16.msra.mxu0 %v569
    %732 = vmatprep.subr.bf16.mxu0 0
    %733 = vmatpush1.bf16.msra.mxu0 %v568
    %734 = vmatprep.subr.bf16.mxu0 0
    %735 = vmatpush1.bf16.msra.mxu0 %v567
    %736 = vmatprep.subr.bf16.mxu0 0
    %737 = vmatpush1.bf16.msra.mxu0 %v566
    %738 = vmatprep.subr.bf16.mxu0 0
    %739 = vmatpush1.bf16.msra.mxu0 %v565
    %740 = vmatprep.subr.bf16.mxu0 0
    %741 = vmatpush1.bf16.msra.mxu0 %v564
    %742 = vmatprep.subr.bf16.mxu0 0
    %743 = vmatpush1.bf16.msra.mxu0 %v563
    %744 = vmatprep.subr.bf16.mxu0 0
    %745 = vmatpush1.bf16.msra.mxu0 %v562
    %746 = vmatprep.subr.bf16.mxu0 0
    %747 = vmatpush2.bf16.msra.mxu0 0
    %748 = vmatprep.subr.bf16.mxu0 0
    %749 = vmatpush2.bf16.msra.mxu0 0
    %750 = vmatprep.subr.bf16.mxu0 0
    %751 = vmatpush2.bf16.msra.mxu0 0
    %752 = vmatprep.subr.bf16.mxu0 0
    %753 = vmatpush2.bf16.msra.mxu0 0
    %754 = vmatprep.subr.bf16.mxu0 0
    %755 = vmatpush2.bf16.msra.mxu0 0
    %756 = vmatprep.subr.bf16.mxu0 0
    %757 = vmatpush2.bf16.msra.mxu0 0
    %758 = vmatprep.subr.bf16.mxu0 0
    %759 = vmatpush2.bf16.msra.mxu0 0
    %760 = vmatprep.subr.bf16.mxu0 0
    %761 = vmatpush2.bf16.msra.mxu0 0
    %762 = vmatprep.mubr.bf16.mxu0 0
    %763 = vmatmul.mubr.bf16.gmra.mxu0 %v714
    %v764 = vpop.f32.mrf.mxu0
    %v765 = vadd.f32 %v605, %v764
    %v766 = vpop.f32.mrf.mxu0
    %v767 = vpop.f32.mrf.mxu0
    %v768 = vadd.f32 %v610, %v767
    %v769 = vpop.f32.mrf.mxu0
    %770 = vmatprep.mubr.bf16.mxu0 0
    %771 = vmatmul.mubr.bf16.gmra.mxu0 %v715
    %v772 = vpop.f32.mrf.mxu0
    %v773 = vadd.f32 %v615, %v772
    %v774 = vpop.f32.mrf.mxu0
    %v775 = vpop.f32.mrf.mxu0
    %v776 = vadd.f32 %v620, %v775
    %v777 = vpop.f32.mrf.mxu0
    %778 = vmatprep.mubr.bf16.mxu0 0
    %779 = vmatmul.mubr.bf16.gmra.mxu0 %v716
    %v780 = vpop.f32.mrf.mxu0
    %v781 = vadd.f32 %v625, %v780
    %v782 = vpop.f32.mrf.mxu0
    %v783 = vpop.f32.mrf.mxu0
    %v784 = vadd.f32 %v630, %v783
    %v785 = vpop.f32.mrf.mxu0
    %786 = vmatprep.mubr.bf16.mxu0 0
    %787 = vmatmul.mubr.bf16.gmra.mxu0 %v717
    %v788 = vpop.f32.mrf.mxu0
    %v789 = vadd.f32 %v635, %v788
    %v790 = vpop.f32.mrf.mxu0
    %v791 = vpop.f32.mrf.mxu0
    %v792 = vadd.f32 %v640, %v791
    %v793 = vpop.f32.mrf.mxu0
    %794 = vmatprep.mubr.bf16.mxu0 0
    %795 = vmatmul.mubr.bf16.gmra.mxu0 %v718
    %v796 = vpop.f32.mrf.mxu0
    %v797 = vadd.f32 %v645, %v796
    %v798 = vpop.f32.mrf.mxu0
    %v799 = vpop.f32.mrf.mxu0
    %v800 = vadd.f32 %v650, %v799
    %v801 = vpop.f32.mrf.mxu0
    %802 = vmatprep.mubr.bf16.mxu0 0
    %803 = vmatmul.mubr.bf16.gmra.mxu0 %v719
    %v804 = vpop.f32.mrf.mxu0
    %v805 = vadd.f32 %v655, %v804
    %v806 = vpop.f32.mrf.mxu0
    %v807 = vpop.f32.mrf.mxu0
    %v808 = vadd.f32 %v660, %v807
    %v809 = vpop.f32.mrf.mxu0
    %810 = vmatprep.mubr.bf16.mxu0 0
    %811 = vmatmul.mubr.bf16.gmra.mxu0 %v720
    %v812 = vpop.f32.mrf.mxu0
    %v813 = vadd.f32 %v665, %v812
    %v814 = vpop.f32.mrf.mxu0
    %v815 = vpop.f32.mrf.mxu0
    %v816 = vadd.f32 %v670, %v815
    %v817 = vpop.f32.mrf.mxu0
    %818 = vmatprep.mubr.bf16.mxu0 0
    %819 = vmatmul.mubr.bf16.gmra.mxu0 %v721
    %v820 = vpop.f32.mrf.mxu0
    %v821 = vadd.f32 %v675, %v820
    %v822 = vpop.f32.mrf.mxu0
    %v823 = vpop.f32.mrf.mxu0
    %v824 = vadd.f32 %v680, %v823
    %v825 = vpop.f32.mrf.mxu0
    %826 = vdwg.mxu0
    %v827 = vmax.f32 %v765, 0.0
    %v828 = vmax.f32 %v768, 0.0
    %v829 = vmax.f32 %v773, 0.0
    %v830 = vmax.f32 %v776, 0.0
    %v831 = vmax.f32 %v781, 0.0
    %v832 = vmax.f32 %v784, 0.0
    %v833 = vmax.f32 %v789, 0.0
    %v834 = vmax.f32 %v792, 0.0
    %v835 = vmax.f32 %v797, 0.0
    %v836 = vmax.f32 %v800, 0.0
    %v837 = vmax.f32 %v805, 0.0
    %v838 = vmax.f32 %v808, 0.0
    %v839 = vmax.f32 %v813, 0.0
    %v840 = vmax.f32 %v816, 0.0
    %v841 = vmax.f32 %v821, 0.0
    %v842 = vmax.f32 %v824, 0.0
    %v843 = vmin.f32 %v827, 6.0
    %v844 = vmin.f32 %v828, 6.0
    %v845 = vmin.f32 %v829, 6.0
    %v846 = vmin.f32 %v830, 6.0
    %v847 = vmin.f32 %v831, 6.0
    %v848 = vmin.f32 %v832, 6.0
    %v849 = vmin.f32 %v833, 6.0
    %v850 = vmin.f32 %v834, 6.0
    %v851 = vmin.f32 %v835, 6.0
    %v852 = vmin.f32 %v836, 6.0
    %v853 = vmin.f32 %v837, 6.0
    %v854 = vmin.f32 %v838, 6.0
    %v855 = vmin.f32 %v839, 6.0
    %v856 = vmin.f32 %v840, 6.0
    %v857 = vmin.f32 %v841, 6.0
    %v858 = vmin.f32 %v842, 6.0
    %v859 = vpack.c.bf16 %v844, %v843
    %v860 = vpack.c.bf16 %v846, %v845
    %v861 = vpack.c.bf16 %v848, %v847
    %v862 = vpack.c.bf16 %v850, %v849
    %v863 = vpack.c.bf16 %v852, %v851
    %v864 = vpack.c.bf16 %v854, %v853
    %v865 = vpack.c.bf16 %v856, %v855
    %v866 = vpack.c.bf16 %v858, %v857
    %v867 = vld [vmem:[%s7] sm:$0x3]
    %v868 = vld [vmem:[%s8] sm:$0xf]
    %870 = vset.pattern.permute.xlu0 0
    %871 = vperm.xlu0 %870, %v868
    %v872 = vpop.permute.xlu0 %871
    %874 = vmatprep.subr.bf16.mxu0 0
    %875 = vmatpush1.bf16.msra.mxu0 %v866
    %876 = vmatprep.subr.bf16.mxu0 0
    %877 = vmatpush1.bf16.msra.mxu0 %v865
    %878 = vmatprep.subr.bf16.mxu0 0
    %879 = vmatpush1.bf16.msra.mxu0 %v864
    %880 = vmatprep.subr.bf16.mxu0 0
    %881 = vmatpush1.bf16.msra.mxu0 %v863
    %882 = vmatprep.subr.bf16.mxu0 0
    %883 = vmatpush1.bf16.msra.mxu0 %v862
    %884 = vmatprep.subr.bf16.mxu0 0
    %885 = vmatpush1.bf16.msra.mxu0 %v861
    %886 = vmatprep.subr.bf16.mxu0 0
    %887 = vmatpush1.bf16.msra.mxu0 %v860
    %888 = vmatprep.subr.bf16.mxu0 0
    %889 = vmatpush1.bf16.msra.mxu0 %v859
    %890 = vmatprep.subr.bf16.mxu0 0
    %891 = vmatpush2.bf16.msra.mxu0 0
    %892 = vmatprep.subr.bf16.mxu0 0
    %893 = vmatpush2.bf16.msra.mxu0 0
    %894 = vmatprep.subr.bf16.mxu0 0
    %895 = vmatpush2.bf16.msra.mxu0 0
    %896 = vmatprep.subr.bf16.mxu0 0
    %897 = vmatpush2.bf16.msra.mxu0 0
    %898 = vmatprep.subr.bf16.mxu0 0
    %899 = vmatpush2.bf16.msra.mxu0 0
    %900 = vmatprep.subr.bf16.mxu0 0
    %901 = vmatpush2.bf16.msra.mxu0 0
    %902 = vmatprep.subr.bf16.mxu0 0
    %903 = vmatpush2.bf16.msra.mxu0 0
    %904 = vmatprep.subr.bf16.mxu0 0
    %905 = vmatpush2.bf16.msra.mxu0 0
    %906 = vmatprep.mubr.bf16.mxu0 0
    %907 = vmatmul.mubr.bf16.gmra.mxu0 %v867
    %v908 = vpop.f32.mrf.mxu0
    %v909 = vadd.f32 %v872, %v908
    %v910 = vpop.f32.mrf.mxu0
    %v911 = vpop.f32.mrf.mxu0
    %v912 = vpop.f32.mrf.mxu0
    %913 = vdwg.mxu0
    %914 = vst [vmem:[#allocation2] sm:$0xf] %v909
    // Predicated region
    $region38: #{simple_linear_model.1} parent=1 // pred_check
      _
    $region39: #{simple_linear_model.1} parent=1 // pred_check_branch
      %916 = sbr.rel (0) target = $region41
    $region40: #{simple_linear_model.1} parent=1 // pred_region
      %s918 = ssub.s32 64, 64
      %919 = vsyncadd [#allocation3], %s918
      %s921 = sshll.u32 [#allocation2], 4
      %s922 = int_to_ptr.vmem [resolvable:$true] %s921
      %924 = dma.vmem_to_hbm [thread:$0]  %s922, 64, %s9, [#allocation3]
    $region41: #{simple_linear_model.1} parent=1 // pred_fallthru
      _
    // Predicated region
    $region42: #{simple_linear_model.1} parent=1 // pred_check
      _
    $region43: #{simple_linear_model.1} parent=1 // pred_check_branch
      %926 = sbr.rel (0) target = $region45
    $region44: #{simple_linear_model.1} parent=1 // pred_region
      %927 = dma.done [#allocation3], 64
    $region45: #{simple_linear_model.1} parent=1 // pred_fallthru
      _
    %928 = vsyncpa [#allocation3], 1

</llo_original>
